<compile_context>
chip_gen: v5e
topology: v5e:2x2
jax: 0.10.0
libtpu: 0.0.40
codegen_flags: <defaults>
</compile_context>

<pallas_src>
import functools

import jax
import jax.numpy as jnp
from jax.experimental import pallas as pl
from jax.experimental.pallas import tpu as pltpu

_LANE = 128     # last-dim tiling unit (vreg lanes)
_SUBLANE = 8    # second-last-dim tiling unit (vreg sublanes)


def _round_up(n, m):
    return ((n + m - 1) // m) * m


def _fused_mlp_kernel(*refs, n_layers: int):
    """refs = (x_ref, w0_ref, b0_ref, w1_ref, b1_ref, ..., o_ref).

    All matmuls hit the MXU; bias add + ReLU run on the VPU. Intermediate
    activations live entirely in vregs/VMEM (never written back to HBM).
    """
    x_ref = refs[0]
    o_ref = refs[-1]
    h = x_ref[...]
    for l in range(n_layers):
        w_ref = refs[1 + 2 * l]
        b_ref = refs[2 + 2 * l]
        h = jnp.dot(h, w_ref[...], preferred_element_type=jnp.float32)
        h = h + b_ref[...]          # b is (1, Fout_p): one broadcast per layer
        if l < n_layers - 1:
            h = jnp.maximum(h, 0.0)
    o_ref[...] = h.astype(o_ref.dtype)


def mlp_forward(x, params):
    """x: [B, Fin] f32; params: list of (w [Fin, Fout], b [1, Fout]) f32."""
    n_layers = len(params)
    B, Fin = x.shape

    # Pad batch to sublane multiple and features to lane (128) multiples.
    Bp = _round_up(B, _SUBLANE)
    fin_p = _round_up(Fin, _LANE)
    x_p = jnp.pad(x, ((0, Bp - B), (0, fin_p - Fin)))

    flat_params = []
    for (w, b) in params:
        fi, fo = w.shape
        fo_p = _round_up(fo, _LANE)
        w_p = jnp.pad(w, ((0, fin_p - fi), (0, fo_p - fo)))
        b_p = jnp.pad(b, ((0, 0), (0, fo_p - fo)))
        flat_params += [w_p, b_p]
        fin_p = fo_p
    Fout = params[-1][0].shape[1]
    fout_p = fin_p

    kernel = functools.partial(_fused_mlp_kernel, n_layers=n_layers)
    out_p = pl.pallas_call(
        kernel,
        out_shape=jax.ShapeDtypeStruct((Bp, fout_p), jnp.float32),
        in_specs=[pl.BlockSpec(memory_space=pltpu.MemorySpace.VMEM)
                  for _ in range(1 + 2 * n_layers)],
        out_specs=pl.BlockSpec(memory_space=pltpu.MemorySpace.VMEM),
        compiler_params=pltpu.CompilerParams(vmem_limit_bytes=32 * 1024 * 1024),
    )(x_p, *flat_params)
    return out_p[:B, :Fout]


# Single jitted entry point: padding + fused kernel + slice dispatch as one
# executable (no per-layer eager dispatch from Python).
mlp_forward_jit = jax.jit(mlp_forward)


def init_mlp_params(key, input_size, hidden_size, output_size, layers):
    """Mirrors the torch init: weight ~ N(0, 0.1), bias = 0.

    Weights stored as [F_in, F_out] (transposed vs. torch.nn.Linear) so the
    kernel computes y = x @ W + b.
    """
    sizes = [input_size] + [hidden_size] * (layers - 1) + [output_size]
    params = []
    for i in range(layers):
        key, sub = jax.random.split(key)
        fin, fout = sizes[i], sizes[i + 1]
        w = 0.1 * jax.random.normal(sub, (fin, fout), dtype=jnp.float32)
        b = jnp.zeros((1, fout), dtype=jnp.float32)
        params.append((w, b))
    return params


if __name__ == "__main__":
    # Small shapes consistent with the module: MLP(input_size=16, hidden=32,
    # output=8, layers=3) applied to a batch of 8 vectors.
    batch = 8
    input_size, hidden_size, output_size, layers = 16, 32, 8, 3

    key = jax.random.PRNGKey(0)
    key, kx = jax.random.split(key)
    x = jax.random.normal(kx, (batch, input_size), dtype=jnp.float32)

    params = init_mlp_params(key, input_size, hidden_size, output_size, layers)

    out = mlp_forward_jit(x, params)
    out = jax.block_until_ready(out)

    # Sanity check against a pure-JAX reference of the same forward pass.
    ref = x
    for l, (w, b) in enumerate(params):
        ref = ref @ w + b
        if l < len(params) - 1:
            ref = jnp.maximum(ref, 0.0)
    assert out.shape == (batch, output_size)
    assert jnp.allclose(out, ref, atol=1e-5, rtol=1e-5)

    print("KERNEL_OK")
</pallas_src>

<mosaic_0001>
module attributes {stable_mosaic.version = 11 : i64} {
  func.func @_fused_mlp_kernel(%arg0: memref<8x128xf32, #tpu.memory_space<vmem>>, %arg1: memref<128x128xf32, #tpu.memory_space<vmem>>, %arg2: memref<1x128xf32, #tpu.memory_space<vmem>>, %arg3: memref<128x128xf32, #tpu.memory_space<vmem>>, %arg4: memref<1x128xf32, #tpu.memory_space<vmem>>, %arg5: memref<128x128xf32, #tpu.memory_space<vmem>>, %arg6: memref<1x128xf32, #tpu.memory_space<vmem>>, %arg7: memref<8x128xf32, #tpu.memory_space<vmem>>) attributes {dimension_semantics = [], scalar_prefetch = 0 : i64, scratch_operands = 0 : i64, tpu.core_type = #tpu.core_type<tc>} {
    %c0 = arith.constant 0 : index
    %c0_0 = arith.constant 0 : index
    %0 = vector.load %arg0[%c0, %c0_0] : memref<8x128xf32, #tpu.memory_space<vmem>>, vector<8x128xf32>
    %c0_1 = arith.constant 0 : index
    %c0_2 = arith.constant 0 : index
    %1 = vector.load %arg1[%c0_1, %c0_2] : memref<128x128xf32, #tpu.memory_space<vmem>>, vector<128x128xf32>
    %cst = arith.constant dense<0.000000e+00> : vector<8x128xf32>
    %2 = tpu.matmul %0, %1, %cst {dimension_numbers = #tpu.dot_dimension_numbers<[1], [0], [0], [1], [0, 0, 1, 1], [], []>} : vector<8x128xf32>, vector<128x128xf32>, vector<8x128xf32> -> vector<8x128xf32>
    %c0_3 = arith.constant 0 : index
    %c0_4 = arith.constant 0 : index
    %3 = vector.load %arg2[%c0_3, %c0_4] : memref<1x128xf32, #tpu.memory_space<vmem>>, vector<1x128xf32>
    %4 = vector.broadcast %3 : vector<1x128xf32> to vector<8x128xf32>
    %5 = arith.addf %2, %4 : vector<8x128xf32>
    %cst_5 = arith.constant 0.000000e+00 : f32
    %6 = vector.broadcast %cst_5 : f32 to vector<8x128xf32>
    %7 = arith.maximumf %5, %6 : vector<8x128xf32>
    %c0_6 = arith.constant 0 : index
    %c0_7 = arith.constant 0 : index
    %8 = vector.load %arg3[%c0_6, %c0_7] : memref<128x128xf32, #tpu.memory_space<vmem>>, vector<128x128xf32>
    %cst_8 = arith.constant dense<0.000000e+00> : vector<8x128xf32>
    %9 = tpu.matmul %7, %8, %cst_8 {dimension_numbers = #tpu.dot_dimension_numbers<[1], [0], [0], [1], [0, 0, 1, 1], [], []>} : vector<8x128xf32>, vector<128x128xf32>, vector<8x128xf32> -> vector<8x128xf32>
    %c0_9 = arith.constant 0 : index
    %c0_10 = arith.constant 0 : index
    %10 = vector.load %arg4[%c0_9, %c0_10] : memref<1x128xf32, #tpu.memory_space<vmem>>, vector<1x128xf32>
    %11 = vector.broadcast %10 : vector<1x128xf32> to vector<8x128xf32>
    %12 = arith.addf %9, %11 : vector<8x128xf32>
    %cst_11 = arith.constant 0.000000e+00 : f32
    %13 = vector.broadcast %cst_11 : f32 to vector<8x128xf32>
    %14 = arith.maximumf %12, %13 : vector<8x128xf32>
    %c0_12 = arith.constant 0 : index
    %c0_13 = arith.constant 0 : index
    %15 = vector.load %arg5[%c0_12, %c0_13] : memref<128x128xf32, #tpu.memory_space<vmem>>, vector<128x128xf32>
    %cst_14 = arith.constant dense<0.000000e+00> : vector<8x128xf32>
    %16 = tpu.matmul %14, %15, %cst_14 {dimension_numbers = #tpu.dot_dimension_numbers<[1], [0], [0], [1], [0, 0, 1, 1], [], []>} : vector<8x128xf32>, vector<128x128xf32>, vector<8x128xf32> -> vector<8x128xf32>
    %c0_15 = arith.constant 0 : index
    %c0_16 = arith.constant 0 : index
    %17 = vector.load %arg6[%c0_15, %c0_16] : memref<1x128xf32, #tpu.memory_space<vmem>>, vector<1x128xf32>
    %18 = vector.broadcast %17 : vector<1x128xf32> to vector<8x128xf32>
    %19 = arith.addf %16, %18 : vector<8x128xf32>
    %c0_17 = arith.constant 0 : index
    %c0_18 = arith.constant 0 : index
    %20 = vector.load %arg7[%c0_17, %c0_18] : memref<8x128xf32, #tpu.memory_space<vmem>>, vector<8x128xf32>
    tpu.vector_store %arg7[%c0_17, %c0_18], %19 {strides = array<i32>} : memref<8x128xf32, #tpu.memory_space<vmem>>, vector<8x128xf32>,
    return
  }
}

</mosaic_0001>

<llo_original>
// kernel: mlp_forward.1
$region0: #{mlp_forward.1}
  #allocation0 [shape = 'u32[]', space=smem, size = 0x4, offset = 0x4, fixed_abs, tag = 'smem constant byte address 0x4 - core index']
  #allocation1 [shape = 'u32[72,128]{1,0:T(1,128)}', space=vmem, size = 0x9000, scoped, tag = 'internal scratch']
  %s0 = inlined_call_operand.vmem [shape: f32[8,128], index: 0, kind: input, shape index: {}]
  %s1 = inlined_call_operand.vmem [shape: f32[128,128], index: 1, kind: input, shape index: {}]
  %s2 = inlined_call_operand.vmem [shape: f32[1,128], index: 2, kind: input, shape index: {}]
  %s3 = inlined_call_operand.vmem [shape: f32[128,128], index: 3, kind: input, shape index: {}]
  %s4 = inlined_call_operand.vmem [shape: f32[1,128], index: 4, kind: input, shape index: {}]
  %s5 = inlined_call_operand.vmem [shape: f32[128,128], index: 5, kind: input, shape index: {}]
  %s6 = inlined_call_operand.vmem [shape: f32[1,128], index: 6, kind: input, shape index: {}]
  %s7 = inlined_call_operand.hbm [shape: f32[8,128], index: 7, kind: output, shape index: {}]
  %s8 = sld [smem:[#allocation0]]
  $region38: #{mlp_forward.1} parent=0
    _
  %s10 = ssub.s32 1, %s8
  %s11 = scalar_select 0, %s10, %s8
  $region1: #{mlp_forward.1} parent=0
    #allocation2 [shape = 'u8[4096]{0}', space=vmem, size = 0x1000, scoped, tag = 'output window, operand 0, single buffered']
    #allocation3 [shape = 's32[1]{0}', space=sflag, size = 0x4, scoped, tag = 'scoped memory for mlp_forward.1']
    %12 = vsyncpa [#allocation3], 0
    // Predicated region
    $region2: #{mlp_forward.1} parent=1 // pred_check
      _
    $region3: #{mlp_forward.1} parent=1 // pred_check_branch
      %14 = sbr.rel (0) target = $region5
    $region4: #{mlp_forward.1} parent=1 // pred_region
      _
    $region5: #{mlp_forward.1} parent=1 // pred_fallthru
      _
    // Predicated region
    $region6: #{mlp_forward.1} parent=1 // pred_check
      _
    $region7: #{mlp_forward.1} parent=1 // pred_check_branch
      %16 = sbr.rel (0) target = $region9
    $region8: #{mlp_forward.1} parent=1 // pred_region
      _
    $region9: #{mlp_forward.1} parent=1 // pred_fallthru
      _
    // Predicated region
    $region10: #{mlp_forward.1} parent=1 // pred_check
      _
    $region11: #{mlp_forward.1} parent=1 // pred_check_branch
      %18 = sbr.rel (0) target = $region13
    $region12: #{mlp_forward.1} parent=1 // pred_region
      _
    $region13: #{mlp_forward.1} parent=1 // pred_fallthru
      _
    // Predicated region
    $region14: #{mlp_forward.1} parent=1 // pred_check
      _
    $region15: #{mlp_forward.1} parent=1 // pred_check_branch
      %20 = sbr.rel (0) target = $region17
    $region16: #{mlp_forward.1} parent=1 // pred_region
      _
    $region17: #{mlp_forward.1} parent=1 // pred_fallthru
      _
    // Predicated region
    $region18: #{mlp_forward.1} parent=1 // pred_check
      _
    $region19: #{mlp_forward.1} parent=1 // pred_check_branch
      %22 = sbr.rel (0) target = $region21
    $region20: #{mlp_forward.1} parent=1 // pred_region
      _
    $region21: #{mlp_forward.1} parent=1 // pred_fallthru
      _
    // Predicated region
    $region22: #{mlp_forward.1} parent=1 // pred_check
      _
    $region23: #{mlp_forward.1} parent=1 // pred_check_branch
      %24 = sbr.rel (0) target = $region25
    $region24: #{mlp_forward.1} parent=1 // pred_region
      _
    $region25: #{mlp_forward.1} parent=1 // pred_fallthru
      _
    // Predicated region
    $region26: #{mlp_forward.1} parent=1 // pred_check
      _
    $region27: #{mlp_forward.1} parent=1 // pred_check_branch
      %26 = sbr.rel (0) target = $region29
    $region28: #{mlp_forward.1} parent=1 // pred_region
      _
    $region29: #{mlp_forward.1} parent=1 // pred_fallthru
      _
    %v27 = vld [vmem:[%s0] sm:$0xff]
    %v28 = vld [vmem:[%s1] sm:$0xff]
    %v29 = vld [vmem:[%s1 + $0x8] sm:$0xff]
    %v30 = vld [vmem:[%s1 + $0x10] sm:$0xff]
    %v31 = vld [vmem:[%s1 + $0x18] sm:$0xff]
    %v32 = vld [vmem:[%s1 + $0x20] sm:$0xff]
    %v33 = vld [vmem:[%s1 + $0x28] sm:$0xff]
    %v34 = vld [vmem:[%s1 + $0x30] sm:$0xff]
    %v35 = vld [vmem:[%s1 + $0x38] sm:$0xff]
    %v36 = vld [vmem:[%s1 + $0x40] sm:$0xff]
    %v37 = vld [vmem:[%s1 + $0x48] sm:$0xff]
    %v38 = vld [vmem:[%s1 + $0x50] sm:$0xff]
    %v39 = vld [vmem:[%s1 + $0x58] sm:$0xff]
    %v40 = vld [vmem:[%s1 + $0x60] sm:$0xff]
    %v41 = vld [vmem:[%s1 + $0x68] sm:$0xff]
    %v42 = vld [vmem:[%s1 + $0x70] sm:$0xff]
    %v43 = vld [vmem:[%s1 + $0x78] sm:$0xff]
    %v44 = vld [vmem:[%s2] sm:$0x1]
    %v46 = vperm.slane %v44, 0
    %48 = vmatpush.msra.mxu0 %v43
    %49 = vmatpush.msra.mxu0 %v42
    %50 = vmatpush.msra.mxu0 %v41
    %51 = vmatpush.msra.mxu0 %v40
    %52 = vmatpush.msra.mxu0 %v39
    %53 = vmatpush.msra.mxu0 %v38
    %54 = vmatpush.msra.mxu0 %v37
    %55 = vmatpush.msra.mxu0 %v36
    %56 = vmatpush.msra.mxu0 %v35
    %57 = vmatpush.msra.mxu0 %v34
    %58 = vmatpush.msra.mxu0 %v33
    %59 = vmatpush.msra.mxu0 %v32
    %60 = vmatpush.msra.mxu0 %v31
    %61 = vmatpush.msra.mxu0 %v30
    %62 = vmatpush.msra.mxu0 %v29
    %63 = vmatpush.msra.mxu0 %v28
    %64 = vmatmul.f32.gmra.mxu0 %v27
    %v65 = vpop.f32.mrf.mxu0
    %v66 = vadd.f32 %v46, %v65
    %67 = vdwg.mxu0
    %v68 = vmax.f32 %v66, 0.0
    %v69 = vld [vmem:[%s3] sm:$0xff]
    %v70 = vld [vmem:[%s3 + $0x8] sm:$0xff]
    %v71 = vld [vmem:[%s3 + $0x10] sm:$0xff]
    %v72 = vld [vmem:[%s3 + $0x18] sm:$0xff]
    %v73 = vld [vmem:[%s3 + $0x20] sm:$0xff]
    %v74 = vld [vmem:[%s3 + $0x28] sm:$0xff]
    %v75 = vld [vmem:[%s3 + $0x30] sm:$0xff]
    %v76 = vld [vmem:[%s3 + $0x38] sm:$0xff]
    %v77 = vld [vmem:[%s3 + $0x40] sm:$0xff]
    %v78 = vld [vmem:[%s3 + $0x48] sm:$0xff]
    %v79 = vld [vmem:[%s3 + $0x50] sm:$0xff]
    %v80 = vld [vmem:[%s3 + $0x58] sm:$0xff]
    %v81 = vld [vmem:[%s3 + $0x60] sm:$0xff]
    %v82 = vld [vmem:[%s3 + $0x68] sm:$0xff]
    %v83 = vld [vmem:[%s3 + $0x70] sm:$0xff]
    %v84 = vld [vmem:[%s3 + $0x78] sm:$0xff]
    %v85 = vld [vmem:[%s4] sm:$0x1]
    %v87 = vperm.slane %v85, 0
    %89 = vmatpush.msra.mxu0 %v84
    %90 = vmatpush.msra.mxu0 %v83
    %91 = vmatpush.msra.mxu0 %v82
    %92 = vmatpush.msra.mxu0 %v81
    %93 = vmatpush.msra.mxu0 %v80
    %94 = vmatpush.msra.mxu0 %v79
    %95 = vmatpush.msra.mxu0 %v78
    %96 = vmatpush.msra.mxu0 %v77
    %97 = vmatpush.msra.mxu0 %v76
    %98 = vmatpush.msra.mxu0 %v75
    %99 = vmatpush.msra.mxu0 %v74
    %100 = vmatpush.msra.mxu0 %v73
    %101 = vmatpush.msra.mxu0 %v72
    %102 = vmatpush.msra.mxu0 %v71
    %103 = vmatpush.msra.mxu0 %v70
    %104 = vmatpush.msra.mxu0 %v69
    %105 = vmatmul.f32.gmra.mxu0 %v68
    %v106 = vpop.f32.mrf.mxu0
    %v107 = vadd.f32 %v87, %v106
    %108 = vdwg.mxu0
    %v109 = vmax.f32 %v107, 0.0
    %v110 = vld [vmem:[%s5] sm:$0xff]
    %v111 = vld [vmem:[%s5 + $0x8] sm:$0xff]
    %v112 = vld [vmem:[%s5 + $0x10] sm:$0xff]
    %v113 = vld [vmem:[%s5 + $0x18] sm:$0xff]
    %v114 = vld [vmem:[%s5 + $0x20] sm:$0xff]
    %v115 = vld [vmem:[%s5 + $0x28] sm:$0xff]
    %v116 = vld [vmem:[%s5 + $0x30] sm:$0xff]
    %v117 = vld [vmem:[%s5 + $0x38] sm:$0xff]
    %v118 = vld [vmem:[%s5 + $0x40] sm:$0xff]
    %v119 = vld [vmem:[%s5 + $0x48] sm:$0xff]
    %v120 = vld [vmem:[%s5 + $0x50] sm:$0xff]
    %v121 = vld [vmem:[%s5 + $0x58] sm:$0xff]
    %v122 = vld [vmem:[%s5 + $0x60] sm:$0xff]
    %v123 = vld [vmem:[%s5 + $0x68] sm:$0xff]
    %v124 = vld [vmem:[%s5 + $0x70] sm:$0xff]
    %v125 = vld [vmem:[%s5 + $0x78] sm:$0xff]
    %v126 = vld [vmem:[%s6] sm:$0x1]
    %v128 = vperm.slane %v126, 0
    %130 = vmatpush.msra.mxu0 %v125
    %131 = vmatpush.msra.mxu0 %v124
    %132 = vmatpush.msra.mxu0 %v123
    %133 = vmatpush.msra.mxu0 %v122
    %134 = vmatpush.msra.mxu0 %v121
    %135 = vmatpush.msra.mxu0 %v120
    %136 = vmatpush.msra.mxu0 %v119
    %137 = vmatpush.msra.mxu0 %v118
    %138 = vmatpush.msra.mxu0 %v117
    %139 = vmatpush.msra.mxu0 %v116
    %140 = vmatpush.msra.mxu0 %v115
    %141 = vmatpush.msra.mxu0 %v114
    %142 = vmatpush.msra.mxu0 %v113
    %143 = vmatpush.msra.mxu0 %v112
    %144 = vmatpush.msra.mxu0 %v111
    %145 = vmatpush.msra.mxu0 %v110
    %146 = vmatmul.f32.gmra.mxu0 %v109
    %v147 = vpop.f32.mrf.mxu0
    %v148 = vadd.f32 %v128, %v147
    %149 = vdwg.mxu0
    %150 = vst [vmem:[#allocation2] sm:$0xff] %v148
    // Predicated region
    $region30: #{mlp_forward.1} parent=1 // pred_check
      _
    $region31: #{mlp_forward.1} parent=1 // pred_check_branch
      %152 = sbr.rel (0) target = $region33
    $region32: #{mlp_forward.1} parent=1 // pred_region
      %154 = vsyncadd [#allocation3], 0
      %s156 = sshll.u32 [#allocation2], 4
      %s157 = int_to_ptr.vmem [resolvable:$true] %s156
      %s158 = sshll.u32 %s7, 4
      %s159 = int_to_ptr.hbm [resolvable:$true] %s158
      %161 = dma.vmem_to_hbm [thread:$0]  %s157, 128, %s159, [#allocation3]
    $region33: #{mlp_forward.1} parent=1 // pred_fallthru
      _
    // Predicated region
    $region34: #{mlp_forward.1} parent=1 // pred_check
      _
    $region35: #{mlp_forward.1} parent=1 // pred_check_branch
      %163 = sbr.rel (0) target = $region37
    $region36: #{mlp_forward.1} parent=1 // pred_region
      %165 = dma.done [#allocation3], 128
    $region37: #{mlp_forward.1} parent=1 // pred_fallthru
      _
    %166 = vsyncpa [#allocation3], 1

</llo_original>
